<compile_context>
chip_gen: v7x
topology: tpu7x:2x2x1
jax: 0.10.0
libtpu: 0.0.40
codegen_flags: <defaults>
</compile_context>

<pallas_src>
import functools

import jax
import jax.numpy as jnp
from jax.experimental import pallas as pl
from jax.experimental.pallas import tpu as pltpu

LN_EPS = 1e-5  # torch.nn.LayerNorm default


def _patch_embed_kernel(x_ref, w_ref, p_ref, o_ref, *, fused_moments):
    # x_ref: (Bb, Kp, tn)  patch tile, lane-dense along patches; row K is the
    #                      all-ones bias row, rows > K are zero padding.
    # w_ref: (E, Kp)       [conv weight | conv bias | zero pad], resident.
    # p_ref: (E, 2)        [ln_gamma | ln_beta], f32, resident.
    # o_ref: (Bb, E, tn)   lane-dense output tile.
    w = w_ref[...]
    gamma = p_ref[:, 0:1]                 # (E, 1)
    beta = p_ref[:, 1:2]                  # (E, 1)
    inv_e = 1.0 / w.shape[0]
    for b in range(x_ref.shape[0]):       # static unroll over the batch block
        # bias is folded into the matmul (ones row x bias column); f32 accumulate.
        y = jnp.dot(w, x_ref[b], preferred_element_type=jnp.float32)   # (E, tn)
        if fused_moments:
            # single pass: E[y], E[y^2]  (saves two elementwise passes over (E,tn))
            mean = jnp.sum(y, axis=0, keepdims=True) * inv_e
            var = jnp.maximum(
                jnp.sum(y * y, axis=0, keepdims=True) * inv_e - mean * mean, 0.0)
        else:
            # two-pass form: strict numerical parity with torch.nn.LayerNorm
            mean = jnp.mean(y, axis=0, keepdims=True)
            var = jnp.mean((y - mean) ** 2, axis=0, keepdims=True)
        y_hat = (y - mean) * jax.lax.rsqrt(var + LN_EPS)
        o_ref[b] = (y_hat * gamma + beta).astype(o_ref.dtype)


def _pick_tiles(B, N, target_patches=2048):
    """Lane-dense patch tile (multiple of 128 or full N) + batch block.

    Targets ~2048 patches per grid step (amortizes the ~0.35us/step pipeline
    overhead; HBM roofline plateau is reached at >=512-wide tiles) while keeping
    at least 2 independent grid steps so both v7x TensorCores get work (no-op on
    single-TC v5e/v6e).
    """
    tn = N if N <= target_patches else max((target_patches // 128) * 128, 128)
    bb = max(1, min(B, target_patches // max(tn, 1)))

    def n_steps(bb_, tn_):
        return (-(-B // bb_)) * (-(-N // tn_))

    while bb > 1 and n_steps(bb, tn) < 2:
        bb = max(1, bb // 2)
    if n_steps(bb, tn) < 2 and tn == N and N > 128:
        tn = min(N, ((-(-N // 2) + 127) // 128) * 128)   # split patch axis
    return bb, tn


def patch_embed_pallas(x, conv_w, conv_b, ln_gamma, ln_beta, patch_size, *,
                       tile_n=None, batch_block=None,
                       compute_dtype=jnp.bfloat16, out_dtype=jnp.bfloat16,
                       fused_moments=True):
    """x: (B, C, H, W). conv_w: (E, C, p, p). Returns (B, E, H//p, W//p) in out_dtype."""
    B, C, H, W = x.shape
    E = conv_w.shape[0]
    p = patch_size
    Hp, Wp = H // p, W // p
    N = Hp * Wp
    K = C * p * p
    Kp = ((K + 1 + 7) // 8) * 8     # +1 bias row, zero-padded up to 8 sublanes

    # --- host-side glue: patch extraction, patches on the lane axis ------------
    #   xp_t[b, (c*p+dy)*p+dx, hy*Wp+hx] = x[b, c, hy*p+dy, hx*p+dx]
    # (row order matches conv_w.reshape(E, C*p*p)).  For this module K = 4, so the
    # input is ~50x smaller than the E=96 output and this XLA transpose is <10% of
    # total HBM traffic.
    # TODO(synk): for large K (e.g. C=3, p=16 standard ViT) move patch extraction
    # into the kernel (row-slab DMA per tile); the host transpose would otherwise
    # dominate HBM traffic.
    xp = x.reshape(B, C, Hp, p, Wp, p)
    xp_t = jnp.transpose(xp, (0, 1, 3, 5, 2, 4)).reshape(B, K, N)
    ones = jnp.ones((B, 1, N), xp_t.dtype)
    kpad = jnp.zeros((B, Kp - K - 1, N), xp_t.dtype)
    xp_aug = jnp.concatenate([xp_t, ones, kpad], axis=1).astype(compute_dtype)  # (B,Kp,N)

    w2d = conv_w.reshape(E, K)
    w_aug = jnp.concatenate(
        [w2d, conv_b[:, None], jnp.zeros((E, Kp - K - 1), w2d.dtype)],
        axis=1).astype(compute_dtype)                                           # (E,Kp)
    params = jnp.stack([ln_gamma, ln_beta], axis=1).astype(jnp.float32)         # (E,2)

    bb, tn = _pick_tiles(B, N)
    if tile_n is not None:
        tn = N if tile_n >= N else max((tile_n // 128) * 128, 128)
    if batch_block is not None:
        bb = max(1, min(batch_block, B))
    grid = (pl.cdiv(B, bb), pl.cdiv(N, tn))   # ragged tiles handled by Pallas masking

    in_item = jnp.dtype(compute_dtype).itemsize
    out_item = jnp.dtype(out_dtype).itemsize
    cost = pl.CostEstimate(
        flops=2 * B * E * Kp * N,
        transcendentals=B * N,
        bytes_accessed=int(B * Kp * N * in_item + E * Kp * in_item + E * 2 * 4
                           + B * E * N * out_item))

    kernel = functools.partial(_patch_embed_kernel, fused_moments=fused_moments)
    out = pl.pallas_call(
        kernel,
        out_shape=jax.ShapeDtypeStruct((B, E, N), out_dtype),
        grid_spec=pltpu.PrefetchScalarGridSpec(
            num_scalar_prefetch=0,
            grid=grid,
            in_specs=[
                pl.BlockSpec((bb, Kp, tn), lambda b, i: (b, 0, i)),   # patch tile
                pl.BlockSpec((E, Kp), lambda b, i: (0, 0)),           # weight+bias (resident)
                pl.BlockSpec((E, 2), lambda b, i: (0, 0)),            # gamma/beta (resident)
            ],
            out_specs=pl.BlockSpec((bb, E, tn), lambda b, i: (b, 0, i)),
        ),
        compiler_params=pltpu.CompilerParams(
            dimension_semantics=("parallel", "parallel")),
        cost_estimate=cost,
    )(xp_aug, w_aug, params)

    # (B, E, N) -> (B, E, Hp, Wp): pure reshape, no relayout of the big output.
    return out.reshape(B, E, Hp, Wp)


def patch_embed_ref(x, conv_w, conv_b, ln_gamma, ln_beta, patch_size,
                    compute_dtype=jnp.float32):
    """Pure-JAX reference mirroring the PyTorch forward (optional bf16 MXU operands)."""
    B, C, H, W = x.shape
    E = conv_w.shape[0]
    p = patch_size
    Hp, Wp = H // p, W // p
    K = C * p * p
    xp = x.reshape(B, C, Hp, p, Wp, p)
    xp = jnp.transpose(xp, (0, 2, 4, 1, 3, 5)).reshape(B, Hp * Wp, K)
    y = jnp.dot(xp.astype(compute_dtype),
                conv_w.reshape(E, K).T.astype(compute_dtype),
                preferred_element_type=jnp.float32) + conv_b                  # (B,N,E)
    mean = jnp.mean(y, axis=-1, keepdims=True)
    var = jnp.mean((y - mean) ** 2, axis=-1, keepdims=True)
    y = (y - mean) * jax.lax.rsqrt(var + LN_EPS) * ln_gamma + ln_beta
    return jnp.transpose(y, (0, 2, 1)).reshape(B, E, Hp, Wp)


if __name__ == "__main__":
    # Small shapes consistent with the module: in_chans=1, patch_size=2,
    # embed_dim=96 (init_embd); scaled-down img_size=32 for the default tests.
    B, C, H, W = 2, 1, 32, 32
    p, E = 2, 96

    key = jax.random.PRNGKey(0)
    k_x, k_w, k_b, k_g, k_beta = jax.random.split(key, 5)
    x = jax.random.normal(k_x, (B, C, H, W), dtype=jnp.float32)
    conv_w = 0.1 * jax.random.normal(k_w, (E, C, p, p), dtype=jnp.float32)
    conv_b = 0.01 * jax.random.normal(k_b, (E,), dtype=jnp.float32)
    ln_gamma = 1.0 + 0.05 * jax.random.normal(k_g, (E,), dtype=jnp.float32)
    ln_beta = 0.02 * jax.random.normal(k_beta, (E,), dtype=jnp.float32)

    # 1) Performance-default path: bf16 MXU operands, fused LN moments, bf16 output.
    out = jax.block_until_ready(
        patch_embed_pallas(x, conv_w, conv_b, ln_gamma, ln_beta, p))
    assert out.shape == (B, E, H // p, W // p) and out.dtype == jnp.bfloat16
    ref = patch_embed_ref(x, conv_w, conv_b, ln_gamma, ln_beta, p,
                          compute_dtype=jnp.bfloat16)
    err = float(jnp.max(jnp.abs(out.astype(jnp.float32) - ref)))
    assert jnp.allclose(out.astype(jnp.float32), ref, atol=3e-2, rtol=3e-2), err

    # 2) Strict-parity path: f32 operands, two-pass LN moments, f32 output.
    out_f32 = jax.block_until_ready(
        patch_embed_pallas(x, conv_w, conv_b, ln_gamma, ln_beta, p,
                           compute_dtype=jnp.float32, out_dtype=jnp.float32,
                           fused_moments=False))
    ref_f32 = patch_embed_ref(x, conv_w, conv_b, ln_gamma, ln_beta, p)
    err = float(jnp.max(jnp.abs(out_f32 - ref_f32)))
    assert jnp.allclose(out_f32, ref_f32, atol=1e-4, rtol=1e-4), err

    # 3) Ragged patch tile: N = 18*18 = 324 with tile_n=256 -> masked last tile.
    H2 = W2 = 36
    x2 = jax.random.normal(k_x, (B, C, H2, W2), dtype=jnp.float32)
    out_r = jax.block_until_ready(
        patch_embed_pallas(x2, conv_w, conv_b, ln_gamma, ln_beta, p,
                           tile_n=256, compute_dtype=jnp.float32,
                           out_dtype=jnp.float32, fused_moments=False))
    ref_r = patch_embed_ref(x2, conv_w, conv_b, ln_gamma, ln_beta, p)
    err = float(jnp.max(jnp.abs(out_r - ref_r)))
    assert out_r.shape == (B, E, H2 // p, W2 // p)
    assert jnp.allclose(out_r, ref_r, atol=1e-4, rtol=1e-4), err

    # 4) Full module config: img_size=160 -> N=6400 (multi-tile, ragged last tile
    #    since 6400 = 3*2048 + 256), default performance path.
    x3 = jax.random.normal(k_x, (B, C, 160, 160), dtype=jnp.float32)
    out_full = jax.block_until_ready(
        patch_embed_pallas(x3, conv_w, conv_b, ln_gamma, ln_beta, p))
    ref_full = patch_embed_ref(x3, conv_w, conv_b, ln_gamma, ln_beta, p,
                               compute_dtype=jnp.bfloat16)
    err = float(jnp.max(jnp.abs(out_full.astype(jnp.float32) - ref_full)))
    assert out_full.shape == (B, E, 80, 80)
    assert jnp.allclose(out_full.astype(jnp.float32), ref_full,
                        atol=3e-2, rtol=3e-2), err

    print("KERNEL_OK")
</pallas_src>

<mosaic_0001>
module attributes {stable_mosaic.version = 11 : i64} {
  func.func @_patch_embed_kernel(%arg0: i32, %arg1: i32, %arg2: memref<1x8x256xbf16, #tpu.memory_space<vmem>>, %arg3: memref<96x8xbf16, #tpu.memory_space<vmem>>, %arg4: memref<96x2xf32, #tpu.memory_space<vmem>>, %arg5: memref<1x96x256xbf16, #tpu.memory_space<vmem>>) attributes {dimension_semantics = [#tpu.dimension_semantics<parallel>, #tpu.dimension_semantics<parallel>], iteration_bounds = array<i64: 2, 1>, scalar_prefetch = 0 : i64, scratch_operands = 0 : i64, tpu.core_type = #tpu.core_type<tc>, window_params = [{transform_indices = @transform_0, window_bounds = array<i64: 1, 8, 256>}, {pipeline_mode = #tpu.pipeline_mode<synchronous>, transform_indices = @transform_1, window_bounds = array<i64: 96, 8>}, {pipeline_mode = #tpu.pipeline_mode<synchronous>, transform_indices = @transform_2, window_bounds = array<i64: 96, 2>}, {transform_indices = @transform_3, window_bounds = array<i64: 1, 96, 256>}]} {
    %c0 = arith.constant 0 : index
    %c0_0 = arith.constant 0 : index
    %0 = vector.load %arg3[%c0, %c0_0] : memref<96x8xbf16, #tpu.memory_space<vmem>>, vector<96x8xbf16>
    %c0_1 = arith.constant 0 : index
    %c0_2 = arith.constant 0 : index
    %1 = vector.load %arg4[%c0_1, %c0_2] : memref<96x2xf32, #tpu.memory_space<vmem>>, vector<96x1xf32>
    %c0_3 = arith.constant 0 : index
    %c1 = arith.constant 1 : index
    %2 = vector.load %arg4[%c0_3, %c1] : memref<96x2xf32, #tpu.memory_space<vmem>>, vector<96x1xf32>
    %c0_4 = arith.constant 0 : index
    %c0_5 = arith.constant 0 : index
    %c0_6 = arith.constant 0 : index
    %3 = vector.load %arg2[%c0_4, %c0_5, %c0_6] : memref<1x8x256xbf16, #tpu.memory_space<vmem>>, vector<1x8x256xbf16>
    %4 = vector.shape_cast %3 : vector<1x8x256xbf16> to vector<8x256xbf16>
    %cst = arith.constant dense<0.000000e+00> : vector<96x256xf32>
    %5 = tpu.matmul %0, %4, %cst {dimension_numbers = #tpu.dot_dimension_numbers<[1], [0], [0], [1], [0, 0, 1, 1], [], []>} : vector<96x8xbf16>, vector<8x256xbf16>, vector<96x256xf32> -> vector<96x256xf32>
    %cst_7 = arith.constant dense<0.000000e+00> : vector<256xf32>
    %6 = vector.multi_reduction <add>, %5, %cst_7 [0] : vector<96x256xf32> to vector<256xf32>
    %7 = vector.shape_cast %6 : vector<256xf32> to vector<1x256xf32>
    %cst_8 = arith.constant 0.010416667 : f32
    %8 = vector.broadcast %cst_8 : f32 to vector<1x256xf32>
    %9 = arith.mulf %7, %8 : vector<1x256xf32>
    %10 = arith.mulf %5, %5 : vector<96x256xf32>
    %cst_9 = arith.constant dense<0.000000e+00> : vector<256xf32>
    %11 = vector.multi_reduction <add>, %10, %cst_9 [0] : vector<96x256xf32> to vector<256xf32>
    %12 = vector.shape_cast %11 : vector<256xf32> to vector<1x256xf32>
    %cst_10 = arith.constant 0.010416667 : f32
    %13 = vector.broadcast %cst_10 : f32 to vector<1x256xf32>
    %14 = arith.mulf %12, %13 : vector<1x256xf32>
    %15 = arith.mulf %9, %9 : vector<1x256xf32>
    %16 = arith.subf %14, %15 : vector<1x256xf32>
    %cst_11 = arith.constant 0.000000e+00 : f32
    %17 = vector.broadcast %cst_11 : f32 to vector<1x256xf32>
    %18 = arith.maximumf %16, %17 : vector<1x256xf32>
    %19 = vector.broadcast %9 : vector<1x256xf32> to vector<96x256xf32>
    %20 = arith.subf %5, %19 : vector<96x256xf32>
    %cst_12 = arith.constant 9.99999974E-6 : f32
    %21 = vector.broadcast %cst_12 : f32 to vector<1x256xf32>
    %22 = arith.addf %18, %21 : vector<1x256xf32>
    %23 = math.rsqrt %22 : vector<1x256xf32>
    %24 = vector.broadcast %23 : vector<1x256xf32> to vector<96x256xf32>
    %25 = arith.mulf %20, %24 : vector<96x256xf32>
    %26 = vector.broadcast %1 : vector<96x1xf32> to vector<96x256xf32>
    %27 = arith.mulf %25, %26 : vector<96x256xf32>
    %28 = vector.broadcast %2 : vector<96x1xf32> to vector<96x256xf32>
    %29 = arith.addf %27, %28 : vector<96x256xf32>
    %30 = arith.truncf %29 : vector<96x256xf32> to vector<96x256xbf16>
    %c0_13 = arith.constant 0 : index
    %c0_14 = arith.constant 0 : index
    %c0_15 = arith.constant 0 : index
    %31 = vector.load %arg5[%c0_13, %c0_14, %c0_15] : memref<1x96x256xbf16, #tpu.memory_space<vmem>>, vector<1x96x256xbf16>
    %32 = vector.shape_cast %31 : vector<1x96x256xbf16> to vector<96x256xbf16>
    %33 = vector.shape_cast %30 : vector<96x256xbf16> to vector<1x96x256xbf16>
    tpu.vector_store %arg5[%c0_13, %c0_14, %c0_15], %33 {strides = array<i32>} : memref<1x96x256xbf16, #tpu.memory_space<vmem>>, vector<1x96x256xbf16>,
    return
  }
  func.func @transform_0(%arg0: i32, %arg1: i32) -> (i32, i32, i32) {
    %c0_i32 = arith.constant 0 : i32
    %c0_i32_0 = arith.constant 0 : i32
    return %arg0, %c0_i32, %arg1 : i32, i32, i32
  }
  func.func @transform_1(%arg0: i32, %arg1: i32) -> (i32, i32) {
    %c0_i32 = arith.constant 0 : i32
    %c0_i32_0 = arith.constant 0 : i32
    %c0_i32_1 = arith.constant 0 : i32
    return %c0_i32, %c0_i32_0 : i32, i32
  }
  func.func @transform_2(%arg0: i32, %arg1: i32) -> (i32, i32) {
    %c0_i32 = arith.constant 0 : i32
    %c0_i32_0 = arith.constant 0 : i32
    %c0_i32_1 = arith.constant 0 : i32
    return %c0_i32, %c0_i32_0 : i32, i32
  }
  func.func @transform_3(%arg0: i32, %arg1: i32) -> (i32, i32, i32) {
    %c0_i32 = arith.constant 0 : i32
    %c0_i32_0 = arith.constant 0 : i32
    return %arg0, %c0_i32, %arg1 : i32, i32, i32
  }
}

</mosaic_0001>

<llo_original>
// kernel: tpu_custom_call.1
$region0: #{tpu_custom_call.1}
  #allocation0 [shape = 'u32[]', space=smem, size = 0x4, offset = 0x4, fixed_abs, tag = 'smem constant byte address 0x4 - core index']
  #allocation1 [shape = 'u32[144,128]{1,0:T(1,128)}', space=vmem, size = 0x12000, scoped, tag = 'internal scratch']
  %s0 = inlined_call_operand.vmem [shape: bf16[2,8,256], index: 0, kind: input, shape index: {}]
  %s1 = inlined_call_operand.vmem [shape: bf16[96,8], index: 1, kind: input, shape index: {}]
  %s2 = inlined_call_operand.vmem [shape: f32[96,2], index: 2, kind: input, shape index: {}]
  %s3 = inlined_call_operand.hbm [shape: bf16[2,96,256], index: 3, kind: output, shape index: {}]
  %s4 = sld [smem:[#allocation0]]
  $region45: #{tpu_custom_call.1} parent=0
    _
  %s6 = ssub.s32 1, %s4
  %s7 = scalar_select 0, %s6, %s4
  $region1: #{tpu_custom_call.1} parent=0
    #allocation2 [shape = 'u8[98304]{0}', space=vmem, size = 0x18000, scoped, tag = 'output window, operand 0']
    #allocation3 [shape = 's32[2]{0}', space=sflag, size = 0x8, scoped, tag = 'scoped memory for tpu_custom_call.1']
    %8 = vsyncpa [#allocation3], 0
    %s9 = scalar_lea.sflag [#allocation3], 1
    %10 = vsyncpa %s9, 0
    loop: start=0, step=1, limit=4
    $region2: #{tpu_custom_call.1} parent=1 // loop_pre_header
      _
    $region3: #{tpu_custom_call.1} parent=1 // loop_header
      %s12 = sphi 0, %s16
      %p13 = scmp.ge.s32.totalorder %s12, 4
      %s19 = sphi 0, %s31
      %s20 = sphi 0, %s27
      %s21 = sphi 0, %s19
      %s22 = sphi 0, %s20
      %s23 = sphi 0, %s21
      %s24 = sphi 0, %s22
      %s36 = sphi 0, %s38
      %s39 = sphi 0, %s36
      %s40 = sphi 0, %s39
      %s56 = sphi 0, %s40
      %s60 = sphi 0, %s60
      %s62 = sphi 0, %s60
      %s63 = sphi 0, %s62
      %s77 = sphi 0, %s63
      %s81 = sphi 0, %s81
      %s83 = sphi 0, %s81
      %s84 = sphi 0, %s83
      %s98 = sphi 0, %s84
      %s106 = sphi 0, %s108
      %s109 = sphi 0, %s106
      %s110 = sphi 0, %s109
      %s126 = sphi 0, %s110
    $region4: #{tpu_custom_call.1} parent=1 // loop_header_branch
      %15 = sbr.rel (%p13) target = $region8
    $region5: #{tpu_custom_call.1} parent=1 // loop_body
      %s17 = ssub.s32 %s12, 1
      %s18 = ssub.s32 %s12, 2
      %s25 = sadd.s32 1, %s20
      %p26 = scmp.ge.s32.totalorder %s25, 1
      %s27 = scalar_select %p26, 0, %s25
      %s28 = sadd.s32 1, %s19
      %s29 = scalar_select %p26, %s28, %s19
      %p30 = scmp.ge.s32.totalorder %s29, 2
      %s31 = scalar_select %p30, 0, %s29
      %s32 = ssub.s32 %s19, %s31
      %s33 = ssub.s32 %s20, %s27
      %s34 = sor.u32 %s32, %s33
      %p35 = scmp.eq.s32.totalorder %s34, 0
      %s37 = sadd.s32 %s36, 1
      %s38 = scalar_select %p35, %s36, %s37
      %p41 = pneg %p35
      %p42 = scmp.eq.s32.totalorder %s12, 1
      %p43 = por %p41, %p42
      %p44 = scmp.ne.s32.totalorder %s36, %s39
      %p45 = scmp.eq.s32.totalorder %s12, 0
      %p46 = por %p44, %p45
      %p47 = scmp.ne.s32.totalorder %s36, %s39
      %p48 = scmp.eq.s32.totalorder %s17, 1
      %p49 = por %p47, %p48
      %p50 = scmp.ne.s32.totalorder %s39, %s40
      %p51 = scmp.eq.s32.totalorder %s17, 0
      %p52 = por %p50, %p51
      %p53 = scmp.ne.s32.totalorder %s39, %s40
      %p54 = scmp.eq.s32.totalorder %s18, 1
      %p55 = por %p53, %p54
      %p57 = scmp.ne.s32.totalorder %s40, %s56
      %p58 = scmp.eq.s32.totalorder %s18, 0
      %p59 = por %p57, %p58
      %s61 = sadd.s32 %s60, 1
      %p64 = scmp.eq.s32.totalorder %s12, 1
      %p65 = scmp.ne.s32.totalorder %s60, %s62
      %p66 = scmp.eq.s32.totalorder %s12, 0
      %p67 = por %p65, %p66
      %p68 = scmp.ne.s32.totalorder %s60, %s62
      %p69 = scmp.eq.s32.totalorder %s17, 1
      %p70 = por %p68, %p69
      %p71 = scmp.ne.s32.totalorder %s62, %s63
      %p72 = scmp.eq.s32.totalorder %s17, 0
      %p73 = por %p71, %p72
      %p74 = scmp.ne.s32.totalorder %s62, %s63
      %p75 = scmp.eq.s32.totalorder %s18, 1
      %p76 = por %p74, %p75
      %p78 = scmp.ne.s32.totalorder %s63, %s77
      %p79 = scmp.eq.s32.totalorder %s18, 0
      %p80 = por %p78, %p79
      %s82 = sadd.s32 %s81, 1
      %p85 = scmp.eq.s32.totalorder %s12, 1
      %p86 = scmp.ne.s32.totalorder %s81, %s83
      %p87 = scmp.eq.s32.totalorder %s12, 0
      %p88 = por %p86, %p87
      %p89 = scmp.ne.s32.totalorder %s81, %s83
      %p90 = scmp.eq.s32.totalorder %s17, 1
      %p91 = por %p89, %p90
      %p92 = scmp.ne.s32.totalorder %s83, %s84
      %p93 = scmp.eq.s32.totalorder %s17, 0
      %p94 = por %p92, %p93
      %p95 = scmp.ne.s32.totalorder %s83, %s84
      %p96 = scmp.eq.s32.totalorder %s18, 1
      %p97 = por %p95, %p96
      %p99 = scmp.ne.s32.totalorder %s84, %s98
      %p100 = scmp.eq.s32.totalorder %s18, 0
      %p101 = por %p99, %p100
      %s102 = ssub.s32 %s19, %s31
      %s103 = ssub.s32 %s20, %s27
      %s104 = sor.u32 %s102, %s103
      %p105 = scmp.eq.s32.totalorder %s104, 0
      %s107 = sadd.s32 %s106, 1
      %s108 = scalar_select %p105, %s106, %s107
      %p111 = pneg %p105
      %p112 = scmp.eq.s32.totalorder %s12, 1
      %p113 = por %p111, %p112
      %p114 = scmp.ne.s32.totalorder %s106, %s109
      %p115 = scmp.eq.s32.totalorder %s12, 0
      %p116 = por %p114, %p115
      %p117 = scmp.ne.s32.totalorder %s106, %s109
      %p118 = scmp.eq.s32.totalorder %s17, 1
      %p119 = por %p117, %p118
      %p120 = scmp.ne.s32.totalorder %s109, %s110
      %p121 = scmp.eq.s32.totalorder %s17, 0
      %p122 = por %p120, %p121
      %p123 = scmp.ne.s32.totalorder %s109, %s110
      %p124 = scmp.eq.s32.totalorder %s18, 1
      %p125 = por %p123, %p124
      %p127 = scmp.ne.s32.totalorder %s110, %s126
      %p128 = scmp.eq.s32.totalorder %s18, 0
      %p129 = por %p127, %p128
      %p130 = scmp.le.s32.totalorder 1, %s12
      %p131 = scmp.lt.s32.totalorder %s12, 3
      %p132 = pnand %p130, %p131
      %p133 = pneg %p132
      // Predicated region
      $region9: #{tpu_custom_call.1} parent=5 // pred_check
        _
      $region10: #{tpu_custom_call.1} parent=5 // pred_check_branch
        %135 = sbr.rel (%p132) target = $region12
      $region11: #{tpu_custom_call.1} parent=5 // pred_region
        %s136 = ssub.s32 %s12, 1
        // Predicated region
        $region13: #{tpu_custom_call.1} parent=11 // pred_check
          %p137 = pneg %p73
        $region14: #{tpu_custom_call.1} parent=11 // pred_check_branch
          %139 = sbr.rel (%p137) target = $region16
        $region15: #{tpu_custom_call.1} parent=11 // pred_region
          _
        $region16: #{tpu_custom_call.1} parent=11 // pred_fallthru
          _
        // Predicated region
        $region17: #{tpu_custom_call.1} parent=11 // pred_check
          %p140 = pneg %p94
        $region18: #{tpu_custom_call.1} parent=11 // pred_check_branch
          %142 = sbr.rel (%p140) target = $region20
        $region19: #{tpu_custom_call.1} parent=11 // pred_region
          _
        $region20: #{tpu_custom_call.1} parent=11 // pred_fallthru
          _
      $region12: #{tpu_custom_call.1} parent=5 // pred_fallthru
        _
      %p143 = scmp.lt.s32.totalorder %s12, 2
      // Predicated region
      $region21: #{tpu_custom_call.1} parent=5 // pred_check
        %p144 = pneg %p143
      $region22: #{tpu_custom_call.1} parent=5 // pred_check_branch
        %146 = sbr.rel (%p144) target = $region24
      $region23: #{tpu_custom_call.1} parent=5 // pred_region
        // Predicated region
        $region25: #{tpu_custom_call.1} parent=23 // pred_check
          %p147 = pneg %p46
        $region26: #{tpu_custom_call.1} parent=23 // pred_check_branch
          %149 = sbr.rel (%p147) target = $region28
        $region27: #{tpu_custom_call.1} parent=23 // pred_region
          %s150 = smul.u32 2, %s20
          %p151 = scmp.lt.s32.totalorder %s19, 1
          %s152 = scalar_select %p151, %s19, 1
          %p153 = scmp.lt.s32.totalorder %s150, 1
          %s154 = scalar_select %p153, %s150, 1
          %s155 = smul.addr %s152, 2
          %s156 = sadd.s32 %s154, %s155
          %s157 = smul.addr %s156, 4
          %s158 = scalar_lea.vmem %s0, %s157
          %s159 = smul.u32 2, %s20
        $region28: #{tpu_custom_call.1} parent=23 // pred_fallthru
          _
      $region24: #{tpu_custom_call.1} parent=5 // pred_fallthru
        _
      %p160 = scmp.le.s32.totalorder 1, %s12
      %p161 = scmp.lt.s32.totalorder %s12, 3
      %p162 = pnand %p160, %p161
      %p163 = pneg %p162
      // Predicated region
      $region29: #{tpu_custom_call.1} parent=5 // pred_check
        _
      $region30: #{tpu_custom_call.1} parent=5 // pred_check_branch
        %165 = sbr.rel (%p162) target = $region32
      $region31: #{tpu_custom_call.1} parent=5 // pred_region
        %s166 = ssub.s32 %s12, 1
        %s167 = smul.u32 2, %s22
        %p168 = scmp.lt.s32.totalorder %s21, 1
        %s169 = scalar_select %p168, %s21, 1
        %p170 = scmp.lt.s32.totalorder %s167, 1
        %s171 = scalar_select %p170, %s167, 1
        %s172 = smul.addr %s169, 2
        %s173 = sadd.s32 %s171, %s172
        %s174 = smul.addr %s173, 4
        %s175 = scalar_lea.vmem %s0, %s174
        %p176 = pneg %p52
        %p177 = pneg %p49
        %p178 = pneg %p73
        %p179 = pneg %p70
        %p180 = pneg %p94
        %p181 = pneg %p91
        %p182 = pneg %p122
        %p183 = pneg %p119
        %s184 = sand.u32 %s109, 1
        %s185 = scalar_lea.sflag [#allocation3], %s184
        %s186 = sand.u32 %s109, 1
        %s187 = smul.addr %s186, 96
        %s188 = scalar_lea.vmem [#allocation2], %s187
        %s189 = smul.u32 2, %s22
        %p190 = scmp.lt.s32.totalorder %s21, 1
        %s191 = scalar_select %p190, %s21, 1
        %p192 = scmp.lt.s32.totalorder %s189, 1
        %s193 = scalar_select %p192, %s189, 1
        %s194 = smul.addr %s191, 2
        %s195 = sadd.s32 %s193, %s194
        %s196 = smul.addr %s195, 4
        %s197 = scalar_lea.vmem %s0, %s196
        %s198 = smul.u32 2, %s22
        %s199 = smul.u32 2, %s22
        %v201 = vld [vmem:[%s1] sm:$0xf]
        %v202 = vld [vmem:[%s1 + $0x4] sm:$0xf]
        %v203 = vld [vmem:[%s1 + $0x8] sm:$0xf]
        %v204 = vld [vmem:[%s1 + $0xc] sm:$0xf]
        %v205 = vld [vmem:[%s1 + $0x10] sm:$0xf]
        %v206 = vld [vmem:[%s1 + $0x14] sm:$0xf]
        %v207 = vld [vmem:[%s1 + $0x18] sm:$0xf]
        %v208 = vld [vmem:[%s1 + $0x1c] sm:$0xf]
        %v209 = vld [vmem:[%s1 + $0x20] sm:$0xf]
        %v210 = vld [vmem:[%s1 + $0x24] sm:$0xf]
        %v211 = vld [vmem:[%s1 + $0x28] sm:$0xf]
        %v212 = vld [vmem:[%s1 + $0x2c] sm:$0xf]
        %v213 = vld [vmem:[%s2] sm:$0xff]
        %v214 = vld [vmem:[%s2 + $0x8] sm:$0xff]
        %v215 = vld [vmem:[%s2 + $0x10] sm:$0xff]
        %v216 = vld [vmem:[%s2 + $0x18] sm:$0xff]
        %v217 = vld [vmem:[%s2 + $0x20] sm:$0xff]
        %v218 = vld [vmem:[%s2 + $0x28] sm:$0xff]
        %v219 = vld [vmem:[%s2 + $0x30] sm:$0xff]
        %v220 = vld [vmem:[%s2 + $0x38] sm:$0xff]
        %v221 = vld [vmem:[%s2 + $0x40] sm:$0xff]
        %v222 = vld [vmem:[%s2 + $0x48] sm:$0xff]
        %v223 = vld [vmem:[%s2 + $0x50] sm:$0xff]
        %v224 = vld [vmem:[%s2 + $0x58] sm:$0xff]
        %v225 = vld [vmem:[%s197] sm:$0xff]
        %v238 = vunpack.c.l.b16 %v201
        %v239 = vunpack.c.l.b16 %v202
        %v240 = vunpack.c.l.b16 %v203
        %v241 = vunpack.c.l.b16 %v204
        %v242 = vunpack.c.l.b16 %v205
        %v243 = vunpack.c.l.b16 %v206
        %v244 = vunpack.c.l.b16 %v207
        %v245 = vunpack.c.l.b16 %v208
        %v246 = vunpack.c.l.b16 %v209
        %v247 = vunpack.c.l.b16 %v210
        %v248 = vunpack.c.l.b16 %v211
        %v249 = vunpack.c.l.b16 %v212
        %v250 = vpack.c.b16 %v239, %v238
        %v251 = vpack.c.b16 %v241, %v240
        %v252 = vpack.c.b16 %v243, %v242
        %v253 = vpack.c.b16 %v245, %v244
        %v254 = vpack.c.b16 %v247, %v246
        %v255 = vpack.c.b16 %v249, %v248
        %v257 = vunpack.c.l.b16 %v225
        %v258 = vunpack.c.h.b16 %v225
        %v259 = vpack.c.b16 %v257, %v257
        %v260 = vpack.c.b16 %v258, %v258
        %vm261 = vcmask 64512
        %v263 = vsel %vm261, %v250, 0
        %v266 = vsel %vm261, %v251, 0
        %v269 = vsel %vm261, %v252, 0
        %v272 = vsel %vm261, %v253, 0
        %v275 = vsel %vm261, %v254, 0
        %v278 = vsel %vm261, %v255, 0
        %vm280 = vcmask 1043456
        %v282 = vsel %vm280, %v259, 0
        %v285 = vsel %vm280, %v260, 0
        %287 = vmatprep.subr.bf16.mxu0 %v285
        %288 = vmatpush1.bf16.msra.mxu0 %v282
        %289 = vmatprep.subr.bf16.mxu0 0
        %290 = vmatpush1.bf16.msra.mxu0 0
        %291 = vmatprep.subr.bf16.mxu0 0
        %292 = vmatpush1.bf16.msra.mxu0 0
        %293 = vmatprep.subr.bf16.mxu0 0
        %294 = vmatpush1.bf16.msra.mxu0 0
        %295 = vmatprep.subr.bf16.mxu0 0
        %296 = vmatpush1.bf16.msra.mxu0 0
        %297 = vmatprep.subr.bf16.mxu0 0
        %298 = vmatpush1.bf16.msra.mxu0 0
        %299 = vmatprep.subr.bf16.mxu0 0
        %300 = vmatpush1.bf16.msra.mxu0 0
        %301 = vmatprep.subr.bf16.mxu0 0
        %302 = vmatpush1.bf16.msra.mxu0 0
        %303 = vmatprep.subr.bf16.mxu0 0
        %304 = vmatpush1.bf16.msra.mxu0 0
        %305 = vmatprep.subr.bf16.mxu0 0
        %306 = vmatpush1.bf16.msra.mxu0 0
        %307 = vmatprep.subr.bf16.mxu0 0
        %308 = vmatpush1.bf16.msra.mxu0 0
        %309 = vmatprep.subr.bf16.mxu0 0
        %310 = vmatpush1.bf16.msra.mxu0 0
        %311 = vmatprep.subr.bf16.mxu0 0
        %312 = vmatpush1.bf16.msra.mxu0 0
        %313 = vmatprep.subr.bf16.mxu0 0
        %314 = vmatpush1.bf16.msra.mxu0 0
        %315 = vmatprep.subr.bf16.mxu0 0
        %316 = vmatpush1.bf16.msra.mxu0 0
        %317 = vmatprep.subr.bf16.mxu0 0
        %318 = vmatpush1.bf16.msra.mxu0 0
        %319 = vmatprep.mubr.bf16.mxu0 0
        %320 = vmatmul.mubr.bf16.gmra.mrb[0].mxu0 %v263
        %v321 = vpop.f32.mrb[0].mxu0
        %v322 = vadd.f32 0.0, %v321
        %v323 = vpop.f32.mrb[0].mxu0
        %v324 = vadd.f32 0.0, %v323
        %v325 = vpop.f32.mrb[0].mxu0
        %v326 = vadd.f32 0.0, %v325
        %v327 = vpop.f32.mrb[0].mxu0
        %v328 = vadd.f32 0.0, %v327
        %329 = vmatprep.mubr.bf16.mxu0 0
        %330 = vmatmul.mubr.bf16.gmra.mrb[0].mxu0 %v266
        %v331 = vpop.f32.mrb[0].mxu0
        %v332 = vadd.f32 0.0, %v331
        %v333 = vpop.f32.mrb[0].mxu0
        %v334 = vadd.f32 0.0, %v333
        %v335 = vpop.f32.mrb[0].mxu0
        %v336 = vadd.f32 0.0, %v335
        %v337 = vpop.f32.mrb[0].mxu0
        %v338 = vadd.f32 0.0, %v337
        %339 = vmatprep.mubr.bf16.mxu0 0
        %340 = vmatmul.mubr.bf16.gmra.mrb[0].mxu0 %v269
        %v341 = vpop.f32.mrb[0].mxu0
        %v342 = vadd.f32 0.0, %v341
        %v343 = vpop.f32.mrb[0].mxu0
        %v344 = vadd.f32 0.0, %v343
        %v345 = vpop.f32.mrb[0].mxu0
        %v346 = vadd.f32 0.0, %v345
        %v347 = vpop.f32.mrb[0].mxu0
        %v348 = vadd.f32 0.0, %v347
        %349 = vmatprep.mubr.bf16.mxu0 0
        %350 = vmatmul.mubr.bf16.gmra.mrb[0].mxu0 %v272
        %v351 = vpop.f32.mrb[0].mxu0
        %v352 = vadd.f32 0.0, %v351
        %v353 = vpop.f32.mrb[0].mxu0
        %v354 = vadd.f32 0.0, %v353
        %v355 = vpop.f32.mrb[0].mxu0
        %v356 = vadd.f32 0.0, %v355
        %v357 = vpop.f32.mrb[0].mxu0
        %v358 = vadd.f32 0.0, %v357
        %359 = vmatprep.mubr.bf16.mxu0 0
        %360 = vmatmul.mubr.bf16.gmra.mrb[0].mxu0 %v275
        %v361 = vpop.f32.mrb[0].mxu0
        %v362 = vadd.f32 0.0, %v361
        %v363 = vpop.f32.mrb[0].mxu0
        %v364 = vadd.f32 0.0, %v363
        %v365 = vpop.f32.mrb[0].mxu0
        %v366 = vadd.f32 0.0, %v365
        %v367 = vpop.f32.mrb[0].mxu0
        %v368 = vadd.f32 0.0, %v367
        %369 = vmatprep.mubr.bf16.mxu0 0
        %370 = vmatmul.mubr.bf16.gmra.mrb[0].mxu0 %v278
        %v371 = vpop.f32.mrb[0].mxu0
        %v372 = vadd.f32 0.0, %v371
        %v373 = vpop.f32.mrb[0].mxu0
        %v374 = vadd.f32 0.0, %v373
        %v375 = vpop.f32.mrb[0].mxu0
        %v376 = vadd.f32 0.0, %v375
        %v377 = vpop.f32.mrb[0].mxu0
        %v378 = vadd.f32 0.0, %v377
        %379 = vdwg.mxu0
        %v380 = vadd.f32 %v322, %v326
        %v381 = vadd.f32 %v380, %v332
        %v382 = vadd.f32 %v381, %v336
        %v383 = vadd.f32 %v382, %v342
        %v384 = vadd.f32 %v383, %v346
        %v385 = vadd.f32 %v384, %v352
        %v386 = vadd.f32 %v385, %v356
        %v387 = vadd.f32 %v386, %v362
        %v388 = vadd.f32 %v387, %v366
        %v389 = vadd.f32 %v388, %v372
        %v390 = vadd.f32 %v389, %v376
        %v391 = vrot.slane %v390, 4
        %v392 = vadd.f32 %v390, %v391
        %v393 = vrot.slane %v392, 2
        %v394 = vadd.f32 %v392, %v393
        %v395 = vrot.slane %v394, 1
        %v396 = vadd.f32 %v394, %v395
        %v397 = vadd.f32 %v324, %v328
        %v398 = vadd.f32 %v397, %v334
        %v399 = vadd.f32 %v398, %v338
        %v400 = vadd.f32 %v399, %v344
        %v401 = vadd.f32 %v400, %v348
        %v402 = vadd.f32 %v401, %v354
        %v403 = vadd.f32 %v402, %v358
        %v404 = vadd.f32 %v403, %v364
        %v405 = vadd.f32 %v404, %v368
        %v406 = vadd.f32 %v405, %v374
        %v407 = vadd.f32 %v406, %v378
        %v408 = vrot.slane %v407, 4
        %v409 = vadd.f32 %v407, %v408
        %v410 = vrot.slane %v409, 2
        %v411 = vadd.f32 %v409, %v410
        %v412 = vrot.slane %v411, 1
        %v413 = vadd.f32 %v411, %v412
        %v414 = vmul.f32 %v396, 0.010416667
        %v415 = vmul.f32 %v413, 0.010416667
        %v416 = vmul.f32 %v322, %v322
        %v417 = vmul.f32 %v324, %v324
        %v418 = vmul.f32 %v326, %v326
        %v419 = vmul.f32 %v328, %v328
        %v420 = vmul.f32 %v332, %v332
        %v421 = vmul.f32 %v334, %v334
        %v422 = vmul.f32 %v336, %v336
        %v423 = vmul.f32 %v338, %v338
        %v424 = vmul.f32 %v342, %v342
        %v425 = vmul.f32 %v344, %v344
        %v426 = vmul.f32 %v346, %v346
        %v427 = vmul.f32 %v348, %v348
        %v428 = vmul.f32 %v352, %v352
        %v429 = vmul.f32 %v354, %v354
        %v430 = vmul.f32 %v356, %v356
        %v431 = vmul.f32 %v358, %v358
        %v432 = vmul.f32 %v362, %v362
        %v433 = vmul.f32 %v364, %v364
        %v434 = vmul.f32 %v366, %v366
        %v435 = vmul.f32 %v368, %v368
        %v436 = vmul.f32 %v372, %v372
        %v437 = vmul.f32 %v374, %v374
        %v438 = vmul.f32 %v376, %v376
        %v439 = vmul.f32 %v378, %v378
        %v440 = vadd.f32 %v416, %v418
        %v441 = vadd.f32 %v440, %v420
        %v442 = vadd.f32 %v441, %v422
        %v443 = vadd.f32 %v442, %v424
        %v444 = vadd.f32 %v443, %v426
        %v445 = vadd.f32 %v444, %v428
        %v446 = vadd.f32 %v445, %v430
        %v447 = vadd.f32 %v446, %v432
        %v448 = vadd.f32 %v447, %v434
        %v449 = vadd.f32 %v448, %v436
        %v450 = vadd.f32 %v449, %v438
        %v451 = vrot.slane %v450, 4
        %v452 = vadd.f32 %v450, %v451
        %v453 = vrot.slane %v452, 2
        %v454 = vadd.f32 %v452, %v453
        %v455 = vrot.slane %v454, 1
        %v456 = vadd.f32 %v454, %v455
        %v457 = vadd.f32 %v417, %v419
        %v458 = vadd.f32 %v457, %v421
        %v459 = vadd.f32 %v458, %v423
        %v460 = vadd.f32 %v459, %v425
        %v461 = vadd.f32 %v460, %v427
        %v462 = vadd.f32 %v461, %v429
        %v463 = vadd.f32 %v462, %v431
        %v464 = vadd.f32 %v463, %v433
        %v465 = vadd.f32 %v464, %v435
        %v466 = vadd.f32 %v465, %v437
        %v467 = vadd.f32 %v466, %v439
        %v468 = vrot.slane %v467, 4
        %v469 = vadd.f32 %v467, %v468
        %v470 = vrot.slane %v469, 2
        %v471 = vadd.f32 %v469, %v470
        %v472 = vrot.slane %v471, 1
        %v473 = vadd.f32 %v471, %v472
        %v474 = vmul.f32 %v456, 0.010416667
        %v475 = vmul.f32 %v473, 0.010416667
        %v476 = vmul.f32 %v414, %v414
        %v477 = vmul.f32 %v415, %v415
        %v478 = vsub.f32 %v474, %v476
        %v479 = vsub.f32 %v475, %v477
        %v480 = vmax.f32 %v478, 0.0
        %v481 = vmax.f32 %v479, 0.0
        %v482 = vsub.f32 %v322, %v414
        %v483 = vsub.f32 %v324, %v415
        %v484 = vsub.f32 %v326, %v414
        %v485 = vsub.f32 %v328, %v415
        %v486 = vsub.f32 %v332, %v414
        %v487 = vsub.f32 %v334, %v415
        %v488 = vsub.f32 %v336, %v414
        %v489 = vsub.f32 %v338, %v415
        %v490 = vsub.f32 %v342, %v414
        %v491 = vsub.f32 %v344, %v415
        %v492 = vsub.f32 %v346, %v414
        %v493 = vsub.f32 %v348, %v415
        %v494 = vsub.f32 %v352, %v414
        %v495 = vsub.f32 %v354, %v415
        %v496 = vsub.f32 %v356, %v414
        %v497 = vsub.f32 %v358, %v415
        %v498 = vsub.f32 %v362, %v414
        %v499 = vsub.f32 %v364, %v415
        %v500 = vsub.f32 %v366, %v414
        %v501 = vsub.f32 %v368, %v415
        %v502 = vsub.f32 %v372, %v414
        %v503 = vsub.f32 %v374, %v415
        %v504 = vsub.f32 %v376, %v414
        %v505 = vsub.f32 %v378, %v415
        %v506 = vadd.f32 %v480, 1e-05
        %v507 = vadd.f32 %v481, 1e-05
        %v508 = vrsqrt.pop %v506
        %v509 = vrsqrt.pop %v507
        %v510 = vmul.f32 %v482, %v508
        %v511 = vmul.f32 %v483, %v509
        %v512 = vmul.f32 %v484, %v508
        %v513 = vmul.f32 %v485, %v509
        %v514 = vmul.f32 %v486, %v508
        %v515 = vmul.f32 %v487, %v509
        %v516 = vmul.f32 %v488, %v508
        %v517 = vmul.f32 %v489, %v509
        %v518 = vmul.f32 %v490, %v508
        %v519 = vmul.f32 %v491, %v509
        %v520 = vmul.f32 %v492, %v508
        %v521 = vmul.f32 %v493, %v509
        %v522 = vmul.f32 %v494, %v508
        %v523 = vmul.f32 %v495, %v509
        %v524 = vmul.f32 %v496, %v508
        %v525 = vmul.f32 %v497, %v509
        %v526 = vmul.f32 %v498, %v508
        %v527 = vmul.f32 %v499, %v509
        %v528 = vmul.f32 %v500, %v508
        %v529 = vmul.f32 %v501, %v509
        %v530 = vmul.f32 %v502, %v508
        %v531 = vmul.f32 %v503, %v509
        %v532 = vmul.f32 %v504, %v508
        %v533 = vmul.f32 %v505, %v509
        %535 = vset.pattern.permute.xlu0 0
        %536 = vperm.xlu0 %535, %v213
        %v537 = vpop.permute.xlu0 %536
        %540 = vset.pattern.permute.xlu0 0
        %541 = vperm.xlu0 %540, %v214
        %v542 = vpop.permute.xlu0 %541
        %545 = vset.pattern.permute.xlu0 0
        %546 = vperm.xlu0 %545, %v215
        %v547 = vpop.permute.xlu0 %546
        %550 = vset.pattern.permute.xlu0 0
        %551 = vperm.xlu0 %550, %v216
        %v552 = vpop.permute.xlu0 %551
        %555 = vset.pattern.permute.xlu0 0
        %556 = vperm.xlu0 %555, %v217
        %v557 = vpop.permute.xlu0 %556
        %560 = vset.pattern.permute.xlu0 0
        %561 = vperm.xlu0 %560, %v218
        %v562 = vpop.permute.xlu0 %561
        %565 = vset.pattern.permute.xlu0 0
        %566 = vperm.xlu0 %565, %v219
        %v567 = vpop.permute.xlu0 %566
        %570 = vset.pattern.permute.xlu0 0
        %571 = vperm.xlu0 %570, %v220
        %v572 = vpop.permute.xlu0 %571
        %575 = vset.pattern.permute.xlu0 0
        %576 = vperm.xlu0 %575, %v221
        %v577 = vpop.permute.xlu0 %576
        %580 = vset.pattern.permute.xlu0 0
        %581 = vperm.xlu0 %580, %v222
        %v582 = vpop.permute.xlu0 %581
        %585 = vset.pattern.permute.xlu0 0
        %586 = vperm.xlu0 %585, %v223
        %v587 = vpop.permute.xlu0 %586
        %590 = vset.pattern.permute.xlu0 0
        %591 = vperm.xlu0 %590, %v224
        %v592 = vpop.permute.xlu0 %591
        %v594 = vmul.f32 %v510, %v537
        %v595 = vmul.f32 %v511, %v537
        %v596 = vmul.f32 %v512, %v542
        %v597 = vmul.f32 %v513, %v542
        %v598 = vmul.f32 %v514, %v547
        %v599 = vmul.f32 %v515, %v547
        %v600 = vmul.f32 %v516, %v552
        %v601 = vmul.f32 %v517, %v552
        %v602 = vmul.f32 %v518, %v557
        %v603 = vmul.f32 %v519, %v557
        %v604 = vmul.f32 %v520, %v562
        %v605 = vmul.f32 %v521, %v562
        %v606 = vmul.f32 %v522, %v567
        %v607 = vmul.f32 %v523, %v567
        %v608 = vmul.f32 %v524, %v572
        %v609 = vmul.f32 %v525, %v572
        %v610 = vmul.f32 %v526, %v577
        %v611 = vmul.f32 %v527, %v577
        %v612 = vmul.f32 %v528, %v582
        %v613 = vmul.f32 %v529, %v582
        %v614 = vmul.f32 %v530, %v587
        %v615 = vmul.f32 %v531, %v587
        %v616 = vmul.f32 %v532, %v592
        %v617 = vmul.f32 %v533, %v592
        %618 = vset.pattern.permute.xlu0 1
        %619 = vperm.xlu0 %618, %v213
        %v620 = vpop.permute.xlu0 %619
        %622 = vset.pattern.permute.xlu0 1
        %623 = vperm.xlu0 %622, %v214
        %v624 = vpop.permute.xlu0 %623
        %626 = vset.pattern.permute.xlu0 1
        %627 = vperm.xlu0 %626, %v215
        %v628 = vpop.permute.xlu0 %627
        %630 = vset.pattern.permute.xlu0 1
        %631 = vperm.xlu0 %630, %v216
        %v632 = vpop.permute.xlu0 %631
        %634 = vset.pattern.permute.xlu0 1
        %635 = vperm.xlu0 %634, %v217
        %v636 = vpop.permute.xlu0 %635
        %638 = vset.pattern.permute.xlu0 1
        %639 = vperm.xlu0 %638, %v218
        %v640 = vpop.permute.xlu0 %639
        %642 = vset.pattern.permute.xlu0 1
        %643 = vperm.xlu0 %642, %v219
        %v644 = vpop.permute.xlu0 %643
        %646 = vset.pattern.permute.xlu0 1
        %647 = vperm.xlu0 %646, %v220
        %v648 = vpop.permute.xlu0 %647
        %650 = vset.pattern.permute.xlu0 1
        %651 = vperm.xlu0 %650, %v221
        %v652 = vpop.permute.xlu0 %651
        %654 = vset.pattern.permute.xlu0 1
        %655 = vperm.xlu0 %654, %v222
        %v656 = vpop.permute.xlu0 %655
        %658 = vset.pattern.permute.xlu0 1
        %659 = vperm.xlu0 %658, %v223
        %v660 = vpop.permute.xlu0 %659
        %662 = vset.pattern.permute.xlu0 1
        %663 = vperm.xlu0 %662, %v224
        %v664 = vpop.permute.xlu0 %663
        %v666 = vadd.f32 %v594, %v620
        %v667 = vadd.f32 %v595, %v620
        %v668 = vadd.f32 %v596, %v624
        %v669 = vadd.f32 %v597, %v624
        %v670 = vadd.f32 %v598, %v628
        %v671 = vadd.f32 %v599, %v628
        %v672 = vadd.f32 %v600, %v632
        %v673 = vadd.f32 %v601, %v632
        %v674 = vadd.f32 %v602, %v636
        %v675 = vadd.f32 %v603, %v636
        %v676 = vadd.f32 %v604, %v640
        %v677 = vadd.f32 %v605, %v640
        %v678 = vadd.f32 %v606, %v644
        %v679 = vadd.f32 %v607, %v644
        %v680 = vadd.f32 %v608, %v648
        %v681 = vadd.f32 %v609, %v648
        %v682 = vadd.f32 %v610, %v652
        %v683 = vadd.f32 %v611, %v652
        %v684 = vadd.f32 %v612, %v656
        %v685 = vadd.f32 %v613, %v656
        %v686 = vadd.f32 %v614, %v660
        %v687 = vadd.f32 %v615, %v660
        %v688 = vadd.f32 %v616, %v664
        %v689 = vadd.f32 %v617, %v664
        %v690 = vpack.c.bf16 %v668, %v666
        %v691 = vpack.c.bf16 %v669, %v667
        %v692 = vpack.c.bf16 %v672, %v670
        %v693 = vpack.c.bf16 %v673, %v671
        %v694 = vpack.c.bf16 %v676, %v674
        %v695 = vpack.c.bf16 %v677, %v675
        %v696 = vpack.c.bf16 %v680, %v678
        %v697 = vpack.c.bf16 %v681, %v679
        %v698 = vpack.c.bf16 %v684, %v682
        %v699 = vpack.c.bf16 %v685, %v683
        %v700 = vpack.c.bf16 %v688, %v686
        %v701 = vpack.c.bf16 %v689, %v687
        %v714 = vunpack.c.l.b16 %v690
        %v715 = vunpack.c.l.b16 %v691
        %v716 = vunpack.c.h.b16 %v690
        %v717 = vunpack.c.h.b16 %v691
        %v718 = vunpack.c.l.b16 %v692
        %v719 = vunpack.c.l.b16 %v693
        %v720 = vunpack.c.h.b16 %v692
        %v721 = vunpack.c.h.b16 %v693
        %v722 = vunpack.c.l.b16 %v694
        %v723 = vunpack.c.l.b16 %v695
        %v724 = vunpack.c.h.b16 %v694
        %v725 = vunpack.c.h.b16 %v695
        %v726 = vunpack.c.l.b16 %v696
        %v727 = vunpack.c.l.b16 %v697
        %v728 = vunpack.c.h.b16 %v696
        %v729 = vunpack.c.h.b16 %v697
        %v730 = vunpack.c.l.b16 %v698
        %v731 = vunpack.c.l.b16 %v699
        %v732 = vunpack.c.h.b16 %v698
        %v733 = vunpack.c.h.b16 %v699
        %v734 = vunpack.c.l.b16 %v700
        %v735 = vunpack.c.l.b16 %v701
        %v736 = vunpack.c.h.b16 %v700
        %v737 = vunpack.c.h.b16 %v701
        %v738 = vpack.c.b16 %v715, %v714
        %v739 = vpack.c.b16 %v717, %v716
        %v740 = vpack.c.b16 %v719, %v718
        %v741 = vpack.c.b16 %v721, %v720
        %v742 = vpack.c.b16 %v723, %v722
        %v743 = vpack.c.b16 %v725, %v724
        %v744 = vpack.c.b16 %v727, %v726
        %v745 = vpack.c.b16 %v729, %v728
        %v746 = vpack.c.b16 %v731, %v730
        %v747 = vpack.c.b16 %v733, %v732
        %v748 = vpack.c.b16 %v735, %v734
        %v749 = vpack.c.b16 %v737, %v736
        %762 = vst [vmem:[%s188] sm:$0xff] %v738
        %763 = vst [vmem:[%s188 + $0x8] sm:$0xff] %v739
        %764 = vst [vmem:[%s188 + $0x10] sm:$0xff] %v740
        %765 = vst [vmem:[%s188 + $0x18] sm:$0xff] %v741
        %766 = vst [vmem:[%s188 + $0x20] sm:$0xff] %v742
        %767 = vst [vmem:[%s188 + $0x28] sm:$0xff] %v743
        %768 = vst [vmem:[%s188 + $0x30] sm:$0xff] %v744
        %769 = vst [vmem:[%s188 + $0x38] sm:$0xff] %v745
        %770 = vst [vmem:[%s188 + $0x40] sm:$0xff] %v746
        %771 = vst [vmem:[%s188 + $0x48] sm:$0xff] %v747
        %772 = vst [vmem:[%s188 + $0x50] sm:$0xff] %v748
        %773 = vst [vmem:[%s188 + $0x58] sm:$0xff] %v749
        %s774 = sand.u32 %s109, 1
        %s775 = scalar_lea.sflag [#allocation3], %s774
        %s776 = sand.u32 %s109, 1
        %s777 = smul.addr %s776, 96
        %s778 = scalar_lea.vmem [#allocation2], %s777
        // Predicated region
        $region33: #{tpu_custom_call.1} parent=31 // pred_check
          %p779 = pneg %p119
        $region34: #{tpu_custom_call.1} parent=31 // pred_check_branch
          %781 = sbr.rel (%p779) target = $region36
        $region35: #{tpu_custom_call.1} parent=31 // pred_region
          %s782 = smul.u32 2, %s22
          %s784 = ssub.s32 1536, 1536
          %785 = vsyncadd %s775, %s784
          %s786 = smul.addr %s21, 24
          %s787 = sadd.s32 %s782, %s786
          %s788 = smul.addr %s787, 64
          %s789 = scalar_lea.hbm %s3, %s788
          %s790 = sshll.u32 %s778, 4
          %s791 = int_to_ptr.vmem [resolvable:$true] %s790
          %796 = dma.vmem_to_hbm [thread:$0]  %s791, 1536, %s789, %s775, 128, 128, 8
        $region36: #{tpu_custom_call.1} parent=31 // pred_fallthru
          _
      $region32: #{tpu_custom_call.1} parent=5 // pred_fallthru
        _
      %p797 = scmp.le.s32.totalorder 2, %s12
      // Predicated region
      $region37: #{tpu_custom_call.1} parent=5 // pred_check
        %p798 = pneg %p797
      $region38: #{tpu_custom_call.1} parent=5 // pred_check_branch
        %800 = sbr.rel (%p798) target = $region40
      $region39: #{tpu_custom_call.1} parent=5 // pred_region
        %s801 = ssub.s32 %s12, 2
        // Predicated region
        $region41: #{tpu_custom_call.1} parent=39 // pred_check
          %p802 = pneg %p125
        $region42: #{tpu_custom_call.1} parent=39 // pred_check_branch
          %804 = sbr.rel (%p802) target = $region44
        $region43: #{tpu_custom_call.1} parent=39 // pred_region
          %s805 = sand.u32 %s110, 1
          %s806 = scalar_lea.sflag [#allocation3], %s805
          %s807 = sand.u32 %s110, 1
          %s808 = smul.addr %s807, 96
          %s809 = scalar_lea.vmem [#allocation2], %s808
          %810 = dma.done %s806, 1536
        $region44: #{tpu_custom_call.1} parent=39 // pred_fallthru
          _
      $region40: #{tpu_custom_call.1} parent=5 // pred_fallthru
        _
    $region6: #{tpu_custom_call.1} parent=1 // loop_footer
      %s16 = sadd.s32 1, %s12
    $region7: #{tpu_custom_call.1} parent=1 // loop_footer_branch
      %11 = sbr.rel target = $region3
    $region8: #{tpu_custom_call.1} parent=1 // loop_exit
      _
    %811 = vsyncpa [#allocation3], 1
    %s812 = scalar_lea.sflag [#allocation3], 1
    %813 = vsyncpa %s812, 1

</llo_original>
